<compile_context>
chip_gen: v5e
topology: v5e:2x2
jax: 0.10.0
libtpu: 0.0.40
codegen_flags: <defaults>
</compile_context>

<pallas_src>
import jax
import jax.numpy as jnp
from jax.experimental import pallas as pl
from jax.experimental.pallas import tpu as pltpu


def _round_up(x, m):
    return ((x + m - 1) // m) * m


def vae1_kernel(x_ref, we1_ref, be1_ref, we2_ref, be2_ref,
                wmulv_ref, bmulv_ref, eps_ref,
                wd1_ref, bd1_ref, wd2_ref, bd2_ref,
                rec_ref, mu_ref, lv_ref):
    f32 = jnp.float32
    feat = mu_ref.shape[-1]
    x = x_ref[...].astype(f32)          # bf16 I/O promotes here; accum stays f32

    # --- Encoder ---
    h = jnp.dot(x, we1_ref[...], preferred_element_type=f32) + be1_ref[...]
    h = jnp.maximum(h, 0.0)
    e = jnp.dot(h, we2_ref[...], preferred_element_type=f32) + be2_ref[...]

    # Fused mu / log_var projection: one (feat, 2*feat) matmul instead of two
    # K=32,N=32 matmuls that badly under-fill the MXU.
    mulv = jnp.dot(e, wmulv_ref[...], preferred_element_type=f32) + bmulv_ref[...]
    mu = mulv[:, :feat]
    lv = mulv[:, feat:]

    # --- Reparameterize (single noise vector broadcast over the batch) ---
    z = eps_ref[...] * jnp.exp(0.5 * lv) + mu

    # --- Decoder ---
    d = jnp.dot(z, wd1_ref[...], preferred_element_type=f32) + bd1_ref[...]
    d = jnp.maximum(d, 0.0)
    y = jnp.dot(d, wd2_ref[...], preferred_element_type=f32) + bd2_ref[...]
    # sigmoid(y) = 0.5 * (tanh(0.5*y) + 1): single EUP transcendental, no divide.
    rec = 0.5 * (jnp.tanh(0.5 * y) + 1.0)

    rec_ref[...] = rec.astype(rec_ref.dtype)
    mu_ref[...] = mu.astype(mu_ref.dtype)
    lv_ref[...] = lv.astype(lv_ref.dtype)


def vae1_forward(x, params, eps, *, batch_tile=1024, bf16_io=False):
    """x: (B, 784) f32; params: tuple of 12 arrays with weights stored (in, out);
    eps: (features,) noise vector. Returns (reconstruction (B,784), mu (B,F), log_var (B,F)).
    bf16_io=True casts x / rec to bf16 at the HBM boundary (accuracy opt-in)."""
    (we1, be1, we2, be2, wmu, bmu, wlv, blv, wd1, bd1, wd2, bd2) = params
    B, in_dim = x.shape
    neurons = we1.shape[1]
    feat = wmu.shape[1]
    out_dim = wd2.shape[1]

    # Fused mu/logvar weights (exact: concatenated output columns).
    wmulv = jnp.concatenate([wmu, wlv], axis=1)          # (feat, 2*feat)
    bmulv = jnp.concatenate([bmu, blv], axis=0)          # (2*feat,)

    # Batch tiling: cap tile at 1024 rows (fits v7x 64 MiB/TC with resident
    # weights + double buffering), keep tiles sublane-aligned (x8), and derive
    # the tile from ceil(B / num_tiles) so pad waste is < 8 rows per tile.
    cap = max(8, (min(batch_tile, 1024) // 8) * 8)
    num_tiles = -(-B // cap)
    tb = _round_up(-(-B // num_tiles), 8)
    b_pad = num_tiles * tb

    out_io_dtype = jnp.bfloat16 if bf16_io else x.dtype
    if b_pad != B:
        x = jnp.pad(x, ((0, b_pad - B), (0, 0)))
    if bf16_io:
        x = x.astype(jnp.bfloat16)

    row2d = lambda v: v.reshape(1, -1)
    inputs = [x, we1, row2d(be1), we2, row2d(be2), wmulv, row2d(bmulv),
              row2d(eps), wd1, row2d(bd1), wd2, row2d(bd2)]

    batch_spec = lambda shape: pl.BlockSpec(shape, lambda i: (i, 0))
    resident = lambda shape: pl.BlockSpec(shape, lambda i: (0, 0))   # loaded once

    in_specs = [batch_spec((tb, in_dim))] + [resident(a.shape) for a in inputs[1:]]
    out_shape = (jax.ShapeDtypeStruct((b_pad, out_dim), out_io_dtype),
                 jax.ShapeDtypeStruct((b_pad, feat), jnp.float32),
                 jax.ShapeDtypeStruct((b_pad, feat), jnp.float32))
    out_specs = (batch_spec((tb, out_dim)),
                 batch_spec((tb, feat)),
                 batch_spec((tb, feat)))

    # Scheduler hint: mem-bound streaming kernel.
    stream_itemsize = 2 if bf16_io else 4
    weight_bytes = sum(int(a.size) * 4 for a in inputs[1:])
    cost = pl.CostEstimate(
        flops=int(2 * b_pad * (in_dim * neurons + neurons * feat + feat * 2 * feat
                               + feat * neurons + neurons * out_dim)),
        transcendentals=int(b_pad * (feat + out_dim)),
        bytes_accessed=int(b_pad * (in_dim + out_dim) * stream_itemsize
                           + b_pad * 2 * feat * 4 + weight_bytes))

    rec, mu, lv = pl.pallas_call(
        vae1_kernel,
        grid=(num_tiles,),
        out_shape=out_shape,
        in_specs=in_specs,
        out_specs=out_specs,
        cost_estimate=cost,
        compiler_params=pltpu.CompilerParams(
            dimension_semantics=("parallel",),
            # Large tiles need more than v5e's 16 MiB default scoped VMEM;
            # 48 MiB leaves headroom under v7x's 64 MiB physical per TC.
            vmem_limit_bytes=(48 * 1024 * 1024 if tb >= 512 else None)),
    )(*inputs)

    # No column padding, and only slice off padded batch rows when any were
    # added — for aligned batches the outputs are returned without an extra
    # HBM round-trip.
    if b_pad != B:
        rec, mu, lv = rec[:B], mu[:B], lv[:B]
    return rec, mu, lv


def init_params(key, features, neurons, img_dim=784):
    """Deterministic init mimicking torch.nn.Linear (uniform +-1/sqrt(fan_in)).
    Weights stored (in, out), i.e. transposed relative to PyTorch."""
    def linear(k, fan_in, fan_out):
        kw, kb = jax.random.split(k)
        bound = 1.0 / jnp.sqrt(fan_in)
        w = jax.random.uniform(kw, (fan_in, fan_out), jnp.float32, -bound, bound)
        b = jax.random.uniform(kb, (fan_out,), jnp.float32, -bound, bound)
        return w, b

    k = jax.random.split(key, 6)
    we1, be1 = linear(k[0], img_dim, neurons)     # enc1: 784 -> neurons
    we2, be2 = linear(k[1], neurons, features)    # enc2: neurons -> features
    wmu, bmu = linear(k[2], features, features)   # mu
    wlv, blv = linear(k[3], features, features)   # logvar
    wd1, bd1 = linear(k[4], features, neurons)    # dec1: features -> neurons
    wd2, bd2 = linear(k[5], neurons, img_dim)     # dec2: neurons -> 784
    return (we1, be1, we2, be2, wmu, bmu, wlv, blv, wd1, bd1, wd2, bd2)


def vae1_reference(x, params, eps):
    (we1, be1, we2, be2, wmu, bmu, wlv, blv, wd1, bd1, wd2, bd2) = params
    h = jnp.maximum(x @ we1 + be1, 0.0)
    e = h @ we2 + be2
    mu = e @ wmu + bmu
    lv = e @ wlv + blv
    z = eps * jnp.exp(0.5 * lv) + mu
    d = jnp.maximum(z @ wd1 + bd1, 0.0)
    rec = jax.nn.sigmoid(d @ wd2 + bd2)
    return rec, mu, lv


if __name__ == "__main__":
    # Small shapes consistent with the module: Vae1(features=32, neurons=64), MNIST-like input.
    batch, features, neurons, img_dim = 8, 32, 64, 784
    key = jax.random.PRNGKey(0)
    kx, kp, ke = jax.random.split(key, 3)
    x = jax.random.normal(kx, (batch, img_dim), jnp.float32)
    params = init_params(kp, features, neurons, img_dim)
    # TODO(synk): torch.randn inside reparameterize has no in-kernel equivalent with
    # matching RNG; the noise is drawn here with jax.random and fed in as an input.
    eps = jax.random.normal(ke, (features,), jnp.float32)

    rec, mu, lv = vae1_forward(x, params, eps)
    rec, mu, lv = jax.block_until_ready((rec, mu, lv))

    ref_rec, ref_mu, ref_lv = vae1_reference(x, params, eps)

    assert rec.shape == (batch, img_dim)
    assert mu.shape == (batch, features) and lv.shape == (batch, features)
    assert jnp.allclose(rec, ref_rec, atol=2e-5, rtol=2e-5)
    assert jnp.allclose(mu, ref_mu, atol=2e-5, rtol=2e-5)
    assert jnp.allclose(lv, ref_lv, atol=2e-5, rtol=2e-5)

    print("KERNEL_OK")
</pallas_src>

<mosaic_0001>
module attributes {stable_mosaic.version = 11 : i64} {
  func.func @vae1_kernel(%arg0: i32, %arg1: memref<8x784xf32, #tpu.memory_space<vmem>>, %arg2: memref<784x64xf32, #tpu.memory_space<vmem>>, %arg3: memref<1x64xf32, #tpu.memory_space<vmem>>, %arg4: memref<64x32xf32, #tpu.memory_space<vmem>>, %arg5: memref<1x32xf32, #tpu.memory_space<vmem>>, %arg6: memref<32x64xf32, #tpu.memory_space<vmem>>, %arg7: memref<1x64xf32, #tpu.memory_space<vmem>>, %arg8: memref<1x32xf32, #tpu.memory_space<vmem>>, %arg9: memref<32x64xf32, #tpu.memory_space<vmem>>, %arg10: memref<1x64xf32, #tpu.memory_space<vmem>>, %arg11: memref<64x784xf32, #tpu.memory_space<vmem>>, %arg12: memref<1x784xf32, #tpu.memory_space<vmem>>, %arg13: memref<8x784xf32, #tpu.memory_space<vmem>>, %arg14: memref<8x32xf32, #tpu.memory_space<vmem>>, %arg15: memref<8x32xf32, #tpu.memory_space<vmem>>) attributes {dimension_semantics = [#tpu.dimension_semantics<parallel>], iteration_bounds = array<i64: 1>, scalar_prefetch = 0 : i64, scratch_operands = 0 : i64, tpu.core_type = #tpu.core_type<tc>, window_params = [{transform_indices = @transform_0, window_bounds = array<i64: 8, 784>}, {pipeline_mode = #tpu.pipeline_mode<synchronous>, transform_indices = @transform_1, window_bounds = array<i64: 784, 64>}, {pipeline_mode = #tpu.pipeline_mode<synchronous>, transform_indices = @transform_2, window_bounds = array<i64: 1, 64>}, {pipeline_mode = #tpu.pipeline_mode<synchronous>, transform_indices = @transform_3, window_bounds = array<i64: 64, 32>}, {pipeline_mode = #tpu.pipeline_mode<synchronous>, transform_indices = @transform_4, window_bounds = array<i64: 1, 32>}, {pipeline_mode = #tpu.pipeline_mode<synchronous>, transform_indices = @transform_5, window_bounds = array<i64: 32, 64>}, {pipeline_mode = #tpu.pipeline_mode<synchronous>, transform_indices = @transform_6, window_bounds = array<i64: 1, 64>}, {pipeline_mode = #tpu.pipeline_mode<synchronous>, transform_indices = @transform_7, window_bounds = array<i64: 1, 32>}, {pipeline_mode = #tpu.pipeline_mode<synchronous>, transform_indices = @transform_8, window_bounds = array<i64: 32, 64>}, {pipeline_mode = #tpu.pipeline_mode<synchronous>, transform_indices = @transform_9, window_bounds = array<i64: 1, 64>}, {pipeline_mode = #tpu.pipeline_mode<synchronous>, transform_indices = @transform_10, window_bounds = array<i64: 64, 784>}, {pipeline_mode = #tpu.pipeline_mode<synchronous>, transform_indices = @transform_11, window_bounds = array<i64: 1, 784>}, {transform_indices = @transform_12, window_bounds = array<i64: 8, 784>}, {transform_indices = @transform_13, window_bounds = array<i64: 8, 32>}, {transform_indices = @transform_14, window_bounds = array<i64: 8, 32>}]} {
    %c0 = arith.constant 0 : index
    %c0_0 = arith.constant 0 : index
    %0 = vector.load %arg1[%c0, %c0_0] : memref<8x784xf32, #tpu.memory_space<vmem>>, vector<8x784xf32>
    %c0_1 = arith.constant 0 : index
    %c0_2 = arith.constant 0 : index
    %1 = vector.load %arg2[%c0_1, %c0_2] : memref<784x64xf32, #tpu.memory_space<vmem>>, vector<784x64xf32>
    %cst = arith.constant dense<0.000000e+00> : vector<8x64xf32>
    %2 = tpu.matmul %0, %1, %cst {dimension_numbers = #tpu.dot_dimension_numbers<[1], [0], [0], [1], [0, 0, 1, 1], [], []>} : vector<8x784xf32>, vector<784x64xf32>, vector<8x64xf32> -> vector<8x64xf32>
    %c0_3 = arith.constant 0 : index
    %c0_4 = arith.constant 0 : index
    %3 = vector.load %arg3[%c0_3, %c0_4] : memref<1x64xf32, #tpu.memory_space<vmem>>, vector<1x64xf32>
    %4 = vector.broadcast %3 : vector<1x64xf32> to vector<8x64xf32>
    %5 = arith.addf %2, %4 : vector<8x64xf32>
    %cst_5 = arith.constant 0.000000e+00 : f32
    %6 = vector.broadcast %cst_5 : f32 to vector<8x64xf32>
    %7 = arith.maximumf %5, %6 : vector<8x64xf32>
    %c0_6 = arith.constant 0 : index
    %c0_7 = arith.constant 0 : index
    %8 = vector.load %arg4[%c0_6, %c0_7] : memref<64x32xf32, #tpu.memory_space<vmem>>, vector<64x32xf32>
    %cst_8 = arith.constant dense<0.000000e+00> : vector<8x32xf32>
    %9 = tpu.matmul %7, %8, %cst_8 {dimension_numbers = #tpu.dot_dimension_numbers<[1], [0], [0], [1], [0, 0, 1, 1], [], []>} : vector<8x64xf32>, vector<64x32xf32>, vector<8x32xf32> -> vector<8x32xf32>
    %c0_9 = arith.constant 0 : index
    %c0_10 = arith.constant 0 : index
    %10 = vector.load %arg5[%c0_9, %c0_10] : memref<1x32xf32, #tpu.memory_space<vmem>>, vector<1x32xf32>
    %11 = vector.broadcast %10 : vector<1x32xf32> to vector<8x32xf32>
    %12 = arith.addf %9, %11 : vector<8x32xf32>
    %c0_11 = arith.constant 0 : index
    %c0_12 = arith.constant 0 : index
    %13 = vector.load %arg6[%c0_11, %c0_12] : memref<32x64xf32, #tpu.memory_space<vmem>>, vector<32x64xf32>
    %cst_13 = arith.constant dense<0.000000e+00> : vector<8x64xf32>
    %14 = tpu.matmul %12, %13, %cst_13 {dimension_numbers = #tpu.dot_dimension_numbers<[1], [0], [0], [1], [0, 0, 1, 1], [], []>} : vector<8x32xf32>, vector<32x64xf32>, vector<8x64xf32> -> vector<8x64xf32>
    %c0_14 = arith.constant 0 : index
    %c0_15 = arith.constant 0 : index
    %15 = vector.load %arg7[%c0_14, %c0_15] : memref<1x64xf32, #tpu.memory_space<vmem>>, vector<1x64xf32>
    %16 = vector.broadcast %15 : vector<1x64xf32> to vector<8x64xf32>
    %17 = arith.addf %14, %16 : vector<8x64xf32>
    %18 = vector.extract_strided_slice %17 {offsets = [0, 0], sizes = [8, 32], strides = [1, 1]} : vector<8x64xf32> to vector<8x32xf32>
    %19 = vector.extract_strided_slice %17 {offsets = [0, 32], sizes = [8, 32], strides = [1, 1]} : vector<8x64xf32> to vector<8x32xf32>
    %c0_16 = arith.constant 0 : index
    %c0_17 = arith.constant 0 : index
    %20 = vector.load %arg8[%c0_16, %c0_17] : memref<1x32xf32, #tpu.memory_space<vmem>>, vector<1x32xf32>
    %cst_18 = arith.constant 5.000000e-01 : f32
    %21 = vector.broadcast %cst_18 : f32 to vector<8x32xf32>
    %22 = arith.mulf %21, %19 : vector<8x32xf32>
    %23 = math.exp %22 : vector<8x32xf32>
    %24 = vector.broadcast %20 : vector<1x32xf32> to vector<8x32xf32>
    %25 = arith.mulf %24, %23 : vector<8x32xf32>
    %26 = arith.addf %25, %18 : vector<8x32xf32>
    %c0_19 = arith.constant 0 : index
    %c0_20 = arith.constant 0 : index
    %27 = vector.load %arg9[%c0_19, %c0_20] : memref<32x64xf32, #tpu.memory_space<vmem>>, vector<32x64xf32>
    %cst_21 = arith.constant dense<0.000000e+00> : vector<8x64xf32>
    %28 = tpu.matmul %26, %27, %cst_21 {dimension_numbers = #tpu.dot_dimension_numbers<[1], [0], [0], [1], [0, 0, 1, 1], [], []>} : vector<8x32xf32>, vector<32x64xf32>, vector<8x64xf32> -> vector<8x64xf32>
    %c0_22 = arith.constant 0 : index
    %c0_23 = arith.constant 0 : index
    %29 = vector.load %arg10[%c0_22, %c0_23] : memref<1x64xf32, #tpu.memory_space<vmem>>, vector<1x64xf32>
    %30 = vector.broadcast %29 : vector<1x64xf32> to vector<8x64xf32>
    %31 = arith.addf %28, %30 : vector<8x64xf32>
    %cst_24 = arith.constant 0.000000e+00 : f32
    %32 = vector.broadcast %cst_24 : f32 to vector<8x64xf32>
    %33 = arith.maximumf %31, %32 : vector<8x64xf32>
    %c0_25 = arith.constant 0 : index
    %c0_26 = arith.constant 0 : index
    %34 = vector.load %arg11[%c0_25, %c0_26] : memref<64x784xf32, #tpu.memory_space<vmem>>, vector<64x784xf32>
    %cst_27 = arith.constant dense<0.000000e+00> : vector<8x784xf32>
    %35 = tpu.matmul %33, %34, %cst_27 {dimension_numbers = #tpu.dot_dimension_numbers<[1], [0], [0], [1], [0, 0, 1, 1], [], []>} : vector<8x64xf32>, vector<64x784xf32>, vector<8x784xf32> -> vector<8x784xf32>
    %c0_28 = arith.constant 0 : index
    %c0_29 = arith.constant 0 : index
    %36 = vector.load %arg12[%c0_28, %c0_29] : memref<1x784xf32, #tpu.memory_space<vmem>>, vector<1x784xf32>
    %37 = vector.broadcast %36 : vector<1x784xf32> to vector<8x784xf32>
    %38 = arith.addf %35, %37 : vector<8x784xf32>
    %cst_30 = arith.constant 5.000000e-01 : f32
    %39 = vector.broadcast %cst_30 : f32 to vector<8x784xf32>
    %40 = arith.mulf %39, %38 : vector<8x784xf32>
    %41 = math.tanh %40 : vector<8x784xf32>
    %cst_31 = arith.constant 1.000000e+00 : f32
    %42 = vector.broadcast %cst_31 : f32 to vector<8x784xf32>
    %43 = arith.addf %41, %42 : vector<8x784xf32>
    %cst_32 = arith.constant 5.000000e-01 : f32
    %44 = vector.broadcast %cst_32 : f32 to vector<8x784xf32>
    %45 = arith.mulf %44, %43 : vector<8x784xf32>
    %c0_33 = arith.constant 0 : index
    %c0_34 = arith.constant 0 : index
    %46 = vector.load %arg13[%c0_33, %c0_34] : memref<8x784xf32, #tpu.memory_space<vmem>>, vector<8x784xf32>
    tpu.vector_store %arg13[%c0_33, %c0_34], %45 {strides = array<i32>} : memref<8x784xf32, #tpu.memory_space<vmem>>, vector<8x784xf32>,
    %c0_35 = arith.constant 0 : index
    %c0_36 = arith.constant 0 : index
    %47 = vector.load %arg14[%c0_35, %c0_36] : memref<8x32xf32, #tpu.memory_space<vmem>>, vector<8x32xf32>
    tpu.vector_store %arg14[%c0_35, %c0_36], %18 {strides = array<i32>} : memref<8x32xf32, #tpu.memory_space<vmem>>, vector<8x32xf32>,
    %c0_37 = arith.constant 0 : index
    %c0_38 = arith.constant 0 : index
    %48 = vector.load %arg15[%c0_37, %c0_38] : memref<8x32xf32, #tpu.memory_space<vmem>>, vector<8x32xf32>
    tpu.vector_store %arg15[%c0_37, %c0_38], %19 {strides = array<i32>} : memref<8x32xf32, #tpu.memory_space<vmem>>, vector<8x32xf32>,
    return
  }
  func.func @transform_0(%arg0: i32) -> (i32, i32) {
    %c0_i32 = arith.constant 0 : i32
    %c0_i32_0 = arith.constant 0 : i32
    return %arg0, %c0_i32 : i32, i32
  }
  func.func @transform_1(%arg0: i32) -> (i32, i32) {
    %c0_i32 = arith.constant 0 : i32
    %c0_i32_0 = arith.constant 0 : i32
    %c0_i32_1 = arith.constant 0 : i32
    return %c0_i32, %c0_i32_0 : i32, i32
  }
  func.func @transform_2(%arg0: i32) -> (i32, i32) {
    %c0_i32 = arith.constant 0 : i32
    %c0_i32_0 = arith.constant 0 : i32
    %c0_i32_1 = arith.constant 0 : i32
    return %c0_i32, %c0_i32_0 : i32, i32
  }
  func.func @transform_3(%arg0: i32) -> (i32, i32) {
    %c0_i32 = arith.constant 0 : i32
    %c0_i32_0 = arith.constant 0 : i32
    %c0_i32_1 = arith.constant 0 : i32
    return %c0_i32, %c0_i32_0 : i32, i32
  }
  func.func @transform_4(%arg0: i32) -> (i32, i32) {
    %c0_i32 = arith.constant 0 : i32
    %c0_i32_0 = arith.constant 0 : i32
    %c0_i32_1 = arith.constant 0 : i32
    return %c0_i32, %c0_i32_0 : i32, i32
  }
  func.func @transform_5(%arg0: i32) -> (i32, i32) {
    %c0_i32 = arith.constant 0 : i32
    %c0_i32_0 = arith.constant 0 : i32
    %c0_i32_1 = arith.constant 0 : i32
    return %c0_i32, %c0_i32_0 : i32, i32
  }
  func.func @transform_6(%arg0: i32) -> (i32, i32) {
    %c0_i32 = arith.constant 0 : i32
    %c0_i32_0 = arith.constant 0 : i32
    %c0_i32_1 = arith.constant 0 : i32
    return %c0_i32, %c0_i32_0 : i32, i32
  }
  func.func @transform_7(%arg0: i32) -> (i32, i32) {
    %c0_i32 = arith.constant 0 : i32
    %c0_i32_0 = arith.constant 0 : i32
    %c0_i32_1 = arith.constant 0 : i32
    return %c0_i32, %c0_i32_0 : i32, i32
  }
  func.func @transform_8(%arg0: i32) -> (i32, i32) {
    %c0_i32 = arith.constant 0 : i32
    %c0_i32_0 = arith.constant 0 : i32
    %c0_i32_1 = arith.constant 0 : i32
    return %c0_i32, %c0_i32_0 : i32, i32
  }
  func.func @transform_9(%arg0: i32) -> (i32, i32) {
    %c0_i32 = arith.constant 0 : i32
    %c0_i32_0 = arith.constant 0 : i32
    %c0_i32_1 = arith.constant 0 : i32
    return %c0_i32, %c0_i32_0 : i32, i32
  }
  func.func @transform_10(%arg0: i32) -> (i32, i32) {
    %c0_i32 = arith.constant 0 : i32
    %c0_i32_0 = arith.constant 0 : i32
    %c0_i32_1 = arith.constant 0 : i32
    return %c0_i32, %c0_i32_0 : i32, i32
  }
  func.func @transform_11(%arg0: i32) -> (i32, i32) {
    %c0_i32 = arith.constant 0 : i32
    %c0_i32_0 = arith.constant 0 : i32
    %c0_i32_1 = arith.constant 0 : i32
    return %c0_i32, %c0_i32_0 : i32, i32
  }
  func.func @transform_12(%arg0: i32) -> (i32, i32) {
    %c0_i32 = arith.constant 0 : i32
    %c0_i32_0 = arith.constant 0 : i32
    return %arg0, %c0_i32 : i32, i32
  }
  func.func @transform_13(%arg0: i32) -> (i32, i32) {
    %c0_i32 = arith.constant 0 : i32
    %c0_i32_0 = arith.constant 0 : i32
    return %arg0, %c0_i32 : i32, i32
  }
  func.func @transform_14(%arg0: i32) -> (i32, i32) {
    %c0_i32 = arith.constant 0 : i32
    %c0_i32_0 = arith.constant 0 : i32
    return %arg0, %c0_i32 : i32, i32
  }
}

</mosaic_0001>

<llo_original>
// kernel: tpu_custom_call.1
$region0: #{tpu_custom_call.1}
  #allocation0 [shape = 'u32[]', space=smem, size = 0x4, offset = 0x4, fixed_abs, tag = 'smem constant byte address 0x4 - core index']
  #allocation1 [shape = 'u32[72,128]{1,0:T(1,128)}', space=vmem, size = 0x9000, scoped, tag = 'internal scratch']
  %s0 = inlined_call_operand.vmem [shape: f32[8,784], index: 0, kind: input, shape index: {}]
  %s1 = inlined_call_operand.vmem [shape: f32[784,64], index: 1, kind: input, shape index: {}]
  %s2 = inlined_call_operand.vmem [shape: f32[1,64], index: 2, kind: input, shape index: {}]
  %s3 = inlined_call_operand.vmem [shape: f32[64,32], index: 3, kind: input, shape index: {}]
  %s4 = inlined_call_operand.vmem [shape: f32[1,32], index: 4, kind: input, shape index: {}]
  %s5 = inlined_call_operand.vmem [shape: f32[32,64], index: 5, kind: input, shape index: {}]
  %s6 = inlined_call_operand.vmem [shape: f32[1,64], index: 6, kind: input, shape index: {}]
  %s7 = inlined_call_operand.vmem [shape: f32[1,32], index: 7, kind: input, shape index: {}]
  %s8 = inlined_call_operand.vmem [shape: f32[32,64], index: 8, kind: input, shape index: {}]
  %s9 = inlined_call_operand.vmem [shape: f32[1,64], index: 9, kind: input, shape index: {}]
  %s10 = inlined_call_operand.vmem [shape: f32[64,784], index: 10, kind: input, shape index: {}]
  %s11 = inlined_call_operand.vmem [shape: f32[1,784], index: 11, kind: input, shape index: {}]
  %s12 = inlined_call_operand.hbm [shape: f32[8,784], index: 12, kind: output, shape index: {0}]
  %s13 = inlined_call_operand.hbm [shape: f32[8,32], index: 13, kind: output, shape index: {1}]
  %s14 = inlined_call_operand.hbm [shape: f32[8,32], index: 14, kind: output, shape index: {2}]
  %15 = xla_tuple %s12, %s13, %s14
  %s16 = sld [smem:[#allocation0]]
  $region74: #{tpu_custom_call.1} parent=0
    _
  %s18 = ssub.s32 1, %s16
  %s19 = scalar_select 0, %s18, %s16
  $region1: #{tpu_custom_call.1} parent=0
    #allocation2 [shape = 'u8[28672]{0}', space=vmem, size = 0x7000, scoped, tag = 'output window, operand 0, single buffered']
    #allocation3 [shape = 's32[1]{0}', space=sflag, size = 0x4, scoped, tag = 'scoped memory for tpu_custom_call.1']
    #allocation4 [shape = 'u8[4096]{0}', space=vmem, size = 0x1000, scoped, tag = 'output window, operand 1, single buffered']
    #allocation5 [shape = 's32[1]{0}', space=sflag, size = 0x4, scoped, tag = 'scoped memory for tpu_custom_call.1']
    #allocation6 [shape = 'u8[4096]{0}', space=vmem, size = 0x1000, scoped, tag = 'output window, operand 2, single buffered']
    %20 = vsyncpa [#allocation3], 0
    %21 = vsyncpa [#allocation5], 0
    // Predicated region
    $region2: #{tpu_custom_call.1} parent=1 // pred_check
      _
    $region3: #{tpu_custom_call.1} parent=1 // pred_check_branch
      %23 = sbr.rel (0) target = $region5
    $region4: #{tpu_custom_call.1} parent=1 // pred_region
      _
    $region5: #{tpu_custom_call.1} parent=1 // pred_fallthru
      _
    // Predicated region
    $region6: #{tpu_custom_call.1} parent=1 // pred_check
      _
    $region7: #{tpu_custom_call.1} parent=1 // pred_check_branch
      %25 = sbr.rel (0) target = $region9
    $region8: #{tpu_custom_call.1} parent=1 // pred_region
      _
    $region9: #{tpu_custom_call.1} parent=1 // pred_fallthru
      _
    // Predicated region
    $region10: #{tpu_custom_call.1} parent=1 // pred_check
      _
    $region11: #{tpu_custom_call.1} parent=1 // pred_check_branch
      %27 = sbr.rel (0) target = $region13
    $region12: #{tpu_custom_call.1} parent=1 // pred_region
      _
    $region13: #{tpu_custom_call.1} parent=1 // pred_fallthru
      _
    // Predicated region
    $region14: #{tpu_custom_call.1} parent=1 // pred_check
      _
    $region15: #{tpu_custom_call.1} parent=1 // pred_check_branch
      %29 = sbr.rel (0) target = $region17
    $region16: #{tpu_custom_call.1} parent=1 // pred_region
      _
    $region17: #{tpu_custom_call.1} parent=1 // pred_fallthru
      _
    // Predicated region
    $region18: #{tpu_custom_call.1} parent=1 // pred_check
      _
    $region19: #{tpu_custom_call.1} parent=1 // pred_check_branch
      %31 = sbr.rel (0) target = $region21
    $region20: #{tpu_custom_call.1} parent=1 // pred_region
      _
    $region21: #{tpu_custom_call.1} parent=1 // pred_fallthru
      _
    // Predicated region
    $region22: #{tpu_custom_call.1} parent=1 // pred_check
      _
    $region23: #{tpu_custom_call.1} parent=1 // pred_check_branch
      %33 = sbr.rel (0) target = $region25
    $region24: #{tpu_custom_call.1} parent=1 // pred_region
      _
    $region25: #{tpu_custom_call.1} parent=1 // pred_fallthru
      _
    // Predicated region
    $region26: #{tpu_custom_call.1} parent=1 // pred_check
      _
    $region27: #{tpu_custom_call.1} parent=1 // pred_check_branch
      %35 = sbr.rel (0) target = $region29
    $region28: #{tpu_custom_call.1} parent=1 // pred_region
      _
    $region29: #{tpu_custom_call.1} parent=1 // pred_fallthru
      _
    // Predicated region
    $region30: #{tpu_custom_call.1} parent=1 // pred_check
      _
    $region31: #{tpu_custom_call.1} parent=1 // pred_check_branch
      %37 = sbr.rel (0) target = $region33
    $region32: #{tpu_custom_call.1} parent=1 // pred_region
      _
    $region33: #{tpu_custom_call.1} parent=1 // pred_fallthru
      _
    // Predicated region
    $region34: #{tpu_custom_call.1} parent=1 // pred_check
      _
    $region35: #{tpu_custom_call.1} parent=1 // pred_check_branch
      %39 = sbr.rel (0) target = $region37
    $region36: #{tpu_custom_call.1} parent=1 // pred_region
      _
    $region37: #{tpu_custom_call.1} parent=1 // pred_fallthru
      _
    // Predicated region
    $region38: #{tpu_custom_call.1} parent=1 // pred_check
      _
    $region39: #{tpu_custom_call.1} parent=1 // pred_check_branch
      %41 = sbr.rel (0) target = $region41
    $region40: #{tpu_custom_call.1} parent=1 // pred_region
      _
    $region41: #{tpu_custom_call.1} parent=1 // pred_fallthru
      _
    // Predicated region
    $region42: #{tpu_custom_call.1} parent=1 // pred_check
      _
    $region43: #{tpu_custom_call.1} parent=1 // pred_check_branch
      %43 = sbr.rel (0) target = $region45
    $region44: #{tpu_custom_call.1} parent=1 // pred_region
      _
    $region45: #{tpu_custom_call.1} parent=1 // pred_fallthru
      _
    // Predicated region
    $region46: #{tpu_custom_call.1} parent=1 // pred_check
      _
    $region47: #{tpu_custom_call.1} parent=1 // pred_check_branch
      %45 = sbr.rel (0) target = $region49
    $region48: #{tpu_custom_call.1} parent=1 // pred_region
      _
    $region49: #{tpu_custom_call.1} parent=1 // pred_fallthru
      _
    %v46 = vld [vmem:[%s0] sm:$0xff]
    %v47 = vld [vmem:[%s0 + $0x8] sm:$0xff]
    %v48 = vld [vmem:[%s0 + $0x10] sm:$0xff]
    %v49 = vld [vmem:[%s0 + $0x18] sm:$0xff]
    %v50 = vld [vmem:[%s0 + $0x20] sm:$0xff]
    %v51 = vld [vmem:[%s0 + $0x28] sm:$0xff]
    %v52 = vld [vmem:[%s0 + $0x30] sm:$0xff]
    %v53 = vld [vmem:[%s1] sm:$0xff]
    %v54 = vld [vmem:[%s1 + $0x8] sm:$0xff]
    %v55 = vld [vmem:[%s1 + $0x10] sm:$0xff]
    %v56 = vld [vmem:[%s1 + $0x18] sm:$0xff]
    %v57 = vld [vmem:[%s1 + $0x20] sm:$0xff]
    %v58 = vld [vmem:[%s1 + $0x28] sm:$0xff]
    %v59 = vld [vmem:[%s1 + $0x30] sm:$0xff]
    %v60 = vld [vmem:[%s1 + $0x38] sm:$0xff]
    %v61 = vld [vmem:[%s1 + $0x40] sm:$0xff]
    %v62 = vld [vmem:[%s1 + $0x48] sm:$0xff]
    %v63 = vld [vmem:[%s1 + $0x50] sm:$0xff]
    %v64 = vld [vmem:[%s1 + $0x58] sm:$0xff]
    %v65 = vld [vmem:[%s1 + $0x60] sm:$0xff]
    %v66 = vld [vmem:[%s1 + $0x68] sm:$0xff]
    %v67 = vld [vmem:[%s1 + $0x70] sm:$0xff]
    %v68 = vld [vmem:[%s1 + $0x78] sm:$0xff]
    %v69 = vld [vmem:[%s1 + $0x80] sm:$0xff]
    %v70 = vld [vmem:[%s1 + $0x88] sm:$0xff]
    %v71 = vld [vmem:[%s1 + $0x90] sm:$0xff]
    %v72 = vld [vmem:[%s1 + $0x98] sm:$0xff]
    %v73 = vld [vmem:[%s1 + $0xa0] sm:$0xff]
    %v74 = vld [vmem:[%s1 + $0xa8] sm:$0xff]
    %v75 = vld [vmem:[%s1 + $0xb0] sm:$0xff]
    %v76 = vld [vmem:[%s1 + $0xb8] sm:$0xff]
    %v77 = vld [vmem:[%s1 + $0xc0] sm:$0xff]
    %v78 = vld [vmem:[%s1 + $0xc8] sm:$0xff]
    %v79 = vld [vmem:[%s1 + $0xd0] sm:$0xff]
    %v80 = vld [vmem:[%s1 + $0xd8] sm:$0xff]
    %v81 = vld [vmem:[%s1 + $0xe0] sm:$0xff]
    %v82 = vld [vmem:[%s1 + $0xe8] sm:$0xff]
    %v83 = vld [vmem:[%s1 + $0xf0] sm:$0xff]
    %v84 = vld [vmem:[%s1 + $0xf8] sm:$0xff]
    %v85 = vld [vmem:[%s1 + $0x100] sm:$0xff]
    %v86 = vld [vmem:[%s1 + $0x108] sm:$0xff]
    %v87 = vld [vmem:[%s1 + $0x110] sm:$0xff]
    %v88 = vld [vmem:[%s1 + $0x118] sm:$0xff]
    %v89 = vld [vmem:[%s1 + $0x120] sm:$0xff]
    %v90 = vld [vmem:[%s1 + $0x128] sm:$0xff]
    %v91 = vld [vmem:[%s1 + $0x130] sm:$0xff]
    %v92 = vld [vmem:[%s1 + $0x138] sm:$0xff]
    %v93 = vld [vmem:[%s1 + $0x140] sm:$0xff]
    %v94 = vld [vmem:[%s1 + $0x148] sm:$0xff]
    %v95 = vld [vmem:[%s1 + $0x150] sm:$0xff]
    %v96 = vld [vmem:[%s1 + $0x158] sm:$0xff]
    %v97 = vld [vmem:[%s1 + $0x160] sm:$0xff]
    %v98 = vld [vmem:[%s1 + $0x168] sm:$0xff]
    %v99 = vld [vmem:[%s1 + $0x170] sm:$0xff]
    %v100 = vld [vmem:[%s1 + $0x178] sm:$0xff]
    %v101 = vld [vmem:[%s1 + $0x180] sm:$0xff]
    %v102 = vld [vmem:[%s1 + $0x188] sm:$0xff]
    %v103 = vld [vmem:[%s1 + $0x190] sm:$0xff]
    %v104 = vld [vmem:[%s1 + $0x198] sm:$0xff]
    %v105 = vld [vmem:[%s1 + $0x1a0] sm:$0xff]
    %v106 = vld [vmem:[%s1 + $0x1a8] sm:$0xff]
    %v107 = vld [vmem:[%s1 + $0x1b0] sm:$0xff]
    %v108 = vld [vmem:[%s1 + $0x1b8] sm:$0xff]
    %v109 = vld [vmem:[%s1 + $0x1c0] sm:$0xff]
    %v110 = vld [vmem:[%s1 + $0x1c8] sm:$0xff]
    %v111 = vld [vmem:[%s1 + $0x1d0] sm:$0xff]
    %v112 = vld [vmem:[%s1 + $0x1d8] sm:$0xff]
    %v113 = vld [vmem:[%s1 + $0x1e0] sm:$0xff]
    %v114 = vld [vmem:[%s1 + $0x1e8] sm:$0xff]
    %v115 = vld [vmem:[%s1 + $0x1f0] sm:$0xff]
    %v116 = vld [vmem:[%s1 + $0x1f8] sm:$0xff]
    %v117 = vld [vmem:[%s1 + $0x200] sm:$0xff]
    %v118 = vld [vmem:[%s1 + $0x208] sm:$0xff]
    %v119 = vld [vmem:[%s1 + $0x210] sm:$0xff]
    %v120 = vld [vmem:[%s1 + $0x218] sm:$0xff]
    %v121 = vld [vmem:[%s1 + $0x220] sm:$0xff]
    %v122 = vld [vmem:[%s1 + $0x228] sm:$0xff]
    %v123 = vld [vmem:[%s1 + $0x230] sm:$0xff]
    %v124 = vld [vmem:[%s1 + $0x238] sm:$0xff]
    %v125 = vld [vmem:[%s1 + $0x240] sm:$0xff]
    %v126 = vld [vmem:[%s1 + $0x248] sm:$0xff]
    %v127 = vld [vmem:[%s1 + $0x250] sm:$0xff]
    %v128 = vld [vmem:[%s1 + $0x258] sm:$0xff]
    %v129 = vld [vmem:[%s1 + $0x260] sm:$0xff]
    %v130 = vld [vmem:[%s1 + $0x268] sm:$0xff]
    %v131 = vld [vmem:[%s1 + $0x270] sm:$0xff]
    %v132 = vld [vmem:[%s1 + $0x278] sm:$0xff]
    %v133 = vld [vmem:[%s1 + $0x280] sm:$0xff]
    %v134 = vld [vmem:[%s1 + $0x288] sm:$0xff]
    %v135 = vld [vmem:[%s1 + $0x290] sm:$0xff]
    %v136 = vld [vmem:[%s1 + $0x298] sm:$0xff]
    %v137 = vld [vmem:[%s1 + $0x2a0] sm:$0xff]
    %v138 = vld [vmem:[%s1 + $0x2a8] sm:$0xff]
    %v139 = vld [vmem:[%s1 + $0x2b0] sm:$0xff]
    %v140 = vld [vmem:[%s1 + $0x2b8] sm:$0xff]
    %v141 = vld [vmem:[%s1 + $0x2c0] sm:$0xff]
    %v142 = vld [vmem:[%s1 + $0x2c8] sm:$0xff]
    %v143 = vld [vmem:[%s1 + $0x2d0] sm:$0xff]
    %v144 = vld [vmem:[%s1 + $0x2d8] sm:$0xff]
    %v145 = vld [vmem:[%s1 + $0x2e0] sm:$0xff]
    %v146 = vld [vmem:[%s1 + $0x2e8] sm:$0xff]
    %v147 = vld [vmem:[%s1 + $0x2f0] sm:$0xff]
    %v148 = vld [vmem:[%s1 + $0x2f8] sm:$0xff]
    %v149 = vld [vmem:[%s1 + $0x300] sm:$0xff]
    %v150 = vld [vmem:[%s1 + $0x308] sm:$0xff]
    %v151 = vld [vmem:[%s2] sm:$0x1]
    %v153 = vperm.slane %v151, 0
    %vm155 = vcmask 130048
    %v157 = vsel %vm155, %v52, 0
    %159 = vmatpush.msra.mxu0 %v68
    %160 = vmatpush.msra.mxu0 %v67
    %161 = vmatpush.msra.mxu0 %v66
    %162 = vmatpush.msra.mxu0 %v65
    %163 = vmatpush.msra.mxu0 %v64
    %164 = vmatpush.msra.mxu0 %v63
    %165 = vmatpush.msra.mxu0 %v62
    %166 = vmatpush.msra.mxu0 %v61
    %167 = vmatpush.msra.mxu0 %v60
    %168 = vmatpush.msra.mxu0 %v59
    %169 = vmatpush.msra.mxu0 %v58
    %170 = vmatpush.msra.mxu0 %v57
    %171 = vmatpush.msra.mxu0 %v56
    %172 = vmatpush.msra.mxu0 %v55
    %173 = vmatpush.msra.mxu0 %v54
    %174 = vmatpush.msra.mxu0 %v53
    %175 = vmatmul.f32.gmra.mxu0 %v46
    %v176 = vpop.f32.mrf.mxu0
    %v177 = vadd.f32 %v153, %v176
    %178 = vdwg.mxu0
    %179 = vmatpush.msra.mxu0 %v84
    %180 = vmatpush.msra.mxu0 %v83
    %181 = vmatpush.msra.mxu0 %v82
    %182 = vmatpush.msra.mxu0 %v81
    %183 = vmatpush.msra.mxu0 %v80
    %184 = vmatpush.msra.mxu0 %v79
    %185 = vmatpush.msra.mxu0 %v78
    %186 = vmatpush.msra.mxu0 %v77
    %187 = vmatpush.msra.mxu0 %v76
    %188 = vmatpush.msra.mxu0 %v75
    %189 = vmatpush.msra.mxu0 %v74
    %190 = vmatpush.msra.mxu0 %v73
    %191 = vmatpush.msra.mxu0 %v72
    %192 = vmatpush.msra.mxu0 %v71
    %193 = vmatpush.msra.mxu0 %v70
    %194 = vmatpush.msra.mxu0 %v69
    %195 = vmatmul.f32.gmra.mxu0 %v47
    %v196 = vpop.f32.mrf.mxu0
    %v197 = vadd.f32 %v177, %v196
    %198 = vdwg.mxu0
    %199 = vmatpush.msra.mxu0 %v100
    %200 = vmatpush.msra.mxu0 %v99
    %201 = vmatpush.msra.mxu0 %v98
    %202 = vmatpush.msra.mxu0 %v97
    %203 = vmatpush.msra.mxu0 %v96
    %204 = vmatpush.msra.mxu0 %v95
    %205 = vmatpush.msra.mxu0 %v94
    %206 = vmatpush.msra.mxu0 %v93
    %207 = vmatpush.msra.mxu0 %v92
    %208 = vmatpush.msra.mxu0 %v91
    %209 = vmatpush.msra.mxu0 %v90
    %210 = vmatpush.msra.mxu0 %v89
    %211 = vmatpush.msra.mxu0 %v88
    %212 = vmatpush.msra.mxu0 %v87
    %213 = vmatpush.msra.mxu0 %v86
    %214 = vmatpush.msra.mxu0 %v85
    %215 = vmatmul.f32.gmra.mxu0 %v48
    %v216 = vpop.f32.mrf.mxu0
    %v217 = vadd.f32 %v197, %v216
    %218 = vdwg.mxu0
    %219 = vmatpush.msra.mxu0 %v116
    %220 = vmatpush.msra.mxu0 %v115
    %221 = vmatpush.msra.mxu0 %v114
    %222 = vmatpush.msra.mxu0 %v113
    %223 = vmatpush.msra.mxu0 %v112
    %224 = vmatpush.msra.mxu0 %v111
    %225 = vmatpush.msra.mxu0 %v110
    %226 = vmatpush.msra.mxu0 %v109
    %227 = vmatpush.msra.mxu0 %v108
    %228 = vmatpush.msra.mxu0 %v107
    %229 = vmatpush.msra.mxu0 %v106
    %230 = vmatpush.msra.mxu0 %v105
    %231 = vmatpush.msra.mxu0 %v104
    %232 = vmatpush.msra.mxu0 %v103
    %233 = vmatpush.msra.mxu0 %v102
    %234 = vmatpush.msra.mxu0 %v101
    %235 = vmatmul.f32.gmra.mxu0 %v49
    %v236 = vpop.f32.mrf.mxu0
    %v237 = vadd.f32 %v217, %v236
    %238 = vdwg.mxu0
    %239 = vmatpush.msra.mxu0 %v132
    %240 = vmatpush.msra.mxu0 %v131
    %241 = vmatpush.msra.mxu0 %v130
    %242 = vmatpush.msra.mxu0 %v129
    %243 = vmatpush.msra.mxu0 %v128
    %244 = vmatpush.msra.mxu0 %v127
    %245 = vmatpush.msra.mxu0 %v126
    %246 = vmatpush.msra.mxu0 %v125
    %247 = vmatpush.msra.mxu0 %v124
    %248 = vmatpush.msra.mxu0 %v123
    %249 = vmatpush.msra.mxu0 %v122
    %250 = vmatpush.msra.mxu0 %v121
    %251 = vmatpush.msra.mxu0 %v120
    %252 = vmatpush.msra.mxu0 %v119
    %253 = vmatpush.msra.mxu0 %v118
    %254 = vmatpush.msra.mxu0 %v117
    %255 = vmatmul.f32.gmra.mxu0 %v50
    %v256 = vpop.f32.mrf.mxu0
    %v257 = vadd.f32 %v237, %v256
    %258 = vdwg.mxu0
    %259 = vmatpush.msra.mxu0 %v148
    %260 = vmatpush.msra.mxu0 %v147
    %261 = vmatpush.msra.mxu0 %v146
    %262 = vmatpush.msra.mxu0 %v145
    %263 = vmatpush.msra.mxu0 %v144
    %264 = vmatpush.msra.mxu0 %v143
    %265 = vmatpush.msra.mxu0 %v142
    %266 = vmatpush.msra.mxu0 %v141
    %267 = vmatpush.msra.mxu0 %v140
    %268 = vmatpush.msra.mxu0 %v139
    %269 = vmatpush.msra.mxu0 %v138
    %270 = vmatpush.msra.mxu0 %v137
    %271 = vmatpush.msra.mxu0 %v136
    %272 = vmatpush.msra.mxu0 %v135
    %273 = vmatpush.msra.mxu0 %v134
    %274 = vmatpush.msra.mxu0 %v133
    %275 = vmatmul.f32.gmra.mxu0 %v51
    %v276 = vpop.f32.mrf.mxu0
    %v277 = vadd.f32 %v257, %v276
    %278 = vdwg.mxu0
    %279 = vmatpush.msra.mxu0 0.0
    %280 = vmatpush.msra.mxu0 0.0
    %281 = vmatpush.msra.mxu0 0.0
    %282 = vmatpush.msra.mxu0 0.0
    %283 = vmatpush.msra.mxu0 0.0
    %284 = vmatpush.msra.mxu0 0.0
    %285 = vmatpush.msra.mxu0 0.0
    %286 = vmatpush.msra.mxu0 0.0
    %287 = vmatpush.msra.mxu0 0.0
    %288 = vmatpush.msra.mxu0 0.0
    %289 = vmatpush.msra.mxu0 0.0
    %290 = vmatpush.msra.mxu0 0.0
    %291 = vmatpush.msra.mxu0 0.0
    %292 = vmatpush.msra.mxu0 0.0
    %293 = vmatpush.msra.mxu0 %v150
    %294 = vmatpush.msra.mxu0 %v149
    %295 = vmatmul.f32.gmra.mxu0 %v157
    %v296 = vpop.f32.mrf.mxu0
    %v297 = vadd.f32 %v277, %v296
    %298 = vdwg.mxu0
    %v299 = vmax.f32 %v297, 0.0
    %v300 = vld [vmem:[%s3] sm:$0xff]
    %v301 = vld [vmem:[%s3 + $0x8] sm:$0xff]
    %v302 = vld [vmem:[%s3 + $0x10] sm:$0xff]
    %v303 = vld [vmem:[%s3 + $0x18] sm:$0xff]
    %v304 = vld [vmem:[%s3 + $0x20] sm:$0xff]
    %v305 = vld [vmem:[%s3 + $0x28] sm:$0xff]
    %v306 = vld [vmem:[%s3 + $0x30] sm:$0xff]
    %v307 = vld [vmem:[%s3 + $0x38] sm:$0xff]
    %v308 = vld [vmem:[%s4] sm:$0x1]
    %v310 = vperm.slane %v308, 0
    %vm312 = vcmask 523264
    %v314 = vsel %vm312, %v299, 0
    %316 = vmatpush.msra.mxu0 0.0
    %317 = vmatpush.msra.mxu0 0.0
    %318 = vmatpush.msra.mxu0 0.0
    %319 = vmatpush.msra.mxu0 0.0
    %320 = vmatpush.msra.mxu0 0.0
    %321 = vmatpush.msra.mxu0 0.0
    %322 = vmatpush.msra.mxu0 0.0
    %323 = vmatpush.msra.mxu0 0.0
    %324 = vmatpush.msra.mxu0 %v307
    %325 = vmatpush.msra.mxu0 %v306
    %326 = vmatpush.msra.mxu0 %v305
    %327 = vmatpush.msra.mxu0 %v304
    %328 = vmatpush.msra.mxu0 %v303
    %329 = vmatpush.msra.mxu0 %v302
    %330 = vmatpush.msra.mxu0 %v301
    %331 = vmatpush.msra.mxu0 %v300
    %332 = vmatmul.f32.gmra.mxu0 %v314
    %v333 = vpop.f32.mrf.mxu0
    %v334 = vadd.f32 %v310, %v333
    %335 = vdwg.mxu0
    %v336 = vld [vmem:[%s5] sm:$0xff]
    %v337 = vld [vmem:[%s5 + $0x8] sm:$0xff]
    %v338 = vld [vmem:[%s5 + $0x10] sm:$0xff]
    %v339 = vld [vmem:[%s5 + $0x18] sm:$0xff]
    %v340 = vld [vmem:[%s6] sm:$0x1]
    %v342 = vperm.slane %v340, 0
    %vm344 = vcmask 261120
    %v346 = vsel %vm344, %v334, 0
    %348 = vmatpush.msra.mxu0 0.0
    %349 = vmatpush.msra.mxu0 0.0
    %350 = vmatpush.msra.mxu0 0.0
    %351 = vmatpush.msra.mxu0 0.0
    %352 = vmatpush.msra.mxu0 0.0
    %353 = vmatpush.msra.mxu0 0.0
    %354 = vmatpush.msra.mxu0 0.0
    %355 = vmatpush.msra.mxu0 0.0
    %356 = vmatpush.msra.mxu0 0.0
    %357 = vmatpush.msra.mxu0 0.0
    %358 = vmatpush.msra.mxu0 0.0
    %359 = vmatpush.msra.mxu0 0.0
    %360 = vmatpush.msra.mxu0 %v339
    %361 = vmatpush.msra.mxu0 %v338
    %362 = vmatpush.msra.mxu0 %v337
    %363 = vmatpush.msra.mxu0 %v336
    %364 = vmatmul.f32.gmra.mxu0 %v346
    %v365 = vpop.f32.mrf.mxu0
    %v366 = vadd.f32 %v342, %v365
    %367 = vdwg.mxu0
    %v368 = vld [vmem:[%s7] sm:$0x1]
    %v369 = vmul.f32 %v366, 0.5
    %v370 = vmul.f32 %v369, 1.442695
    %v371 = vpow.pop %v370
    %v373 = vperm.slane %v368, 0
    %376 = vrot.lane.b32.xlu0 %v371, 96
    %v377 = vpop.permute.xlu0 %376
    %v379 = vmul.f32 %v373, %v377
    %v380 = vadd.f32 %v379, %v366
    %v381 = vld [vmem:[%s8] sm:$0xff]
    %v382 = vld [vmem:[%s8 + $0x8] sm:$0xff]
    %v383 = vld [vmem:[%s8 + $0x10] sm:$0xff]
    %v384 = vld [vmem:[%s8 + $0x18] sm:$0xff]
    %v385 = vld [vmem:[%s9] sm:$0x1]
    %v387 = vperm.slane %v385, 0
    %v390 = vsel %vm344, %v380, 0
    %392 = vmatpush.msra.mxu0 0.0
    %393 = vmatpush.msra.mxu0 0.0
    %394 = vmatpush.msra.mxu0 0.0
    %395 = vmatpush.msra.mxu0 0.0
    %396 = vmatpush.msra.mxu0 0.0
    %397 = vmatpush.msra.mxu0 0.0
    %398 = vmatpush.msra.mxu0 0.0
    %399 = vmatpush.msra.mxu0 0.0
    %400 = vmatpush.msra.mxu0 0.0
    %401 = vmatpush.msra.mxu0 0.0
    %402 = vmatpush.msra.mxu0 0.0
    %403 = vmatpush.msra.mxu0 0.0
    %404 = vmatpush.msra.mxu0 %v384
    %405 = vmatpush.msra.mxu0 %v383
    %406 = vmatpush.msra.mxu0 %v382
    %407 = vmatpush.msra.mxu0 %v381
    %408 = vmatmul.f32.gmra.mxu0 %v390
    %v409 = vpop.f32.mrf.mxu0
    %v410 = vadd.f32 %v387, %v409
    %411 = vdwg.mxu0
    %v412 = vmax.f32 %v410, 0.0
    %v413 = vld [vmem:[%s10] sm:$0xff]
    %v414 = vld [vmem:[%s10 + $0x8] sm:$0xff]
    %v415 = vld [vmem:[%s10 + $0x10] sm:$0xff]
    %v416 = vld [vmem:[%s10 + $0x18] sm:$0xff]
    %v417 = vld [vmem:[%s10 + $0x20] sm:$0xff]
    %v418 = vld [vmem:[%s10 + $0x28] sm:$0xff]
    %v419 = vld [vmem:[%s10 + $0x30] sm:$0xff]
    %v420 = vld [vmem:[%s10 + $0x38] sm:$0xff]
    %v421 = vld [vmem:[%s10 + $0x40] sm:$0xff]
    %v422 = vld [vmem:[%s10 + $0x48] sm:$0xff]
    %v423 = vld [vmem:[%s10 + $0x50] sm:$0xff]
    %v424 = vld [vmem:[%s10 + $0x58] sm:$0xff]
    %v425 = vld [vmem:[%s10 + $0x60] sm:$0xff]
    %v426 = vld [vmem:[%s10 + $0x68] sm:$0xff]
    %v427 = vld [vmem:[%s10 + $0x70] sm:$0xff]
    %v428 = vld [vmem:[%s10 + $0x78] sm:$0xff]
    %v429 = vld [vmem:[%s10 + $0x80] sm:$0xff]
    %v430 = vld [vmem:[%s10 + $0x88] sm:$0xff]
    %v431 = vld [vmem:[%s10 + $0x90] sm:$0xff]
    %v432 = vld [vmem:[%s10 + $0x98] sm:$0xff]
    %v433 = vld [vmem:[%s10 + $0xa0] sm:$0xff]
    %v434 = vld [vmem:[%s10 + $0xa8] sm:$0xff]
    %v435 = vld [vmem:[%s10 + $0xb0] sm:$0xff]
    %v436 = vld [vmem:[%s10 + $0xb8] sm:$0xff]
    %v437 = vld [vmem:[%s10 + $0xc0] sm:$0xff]
    %v438 = vld [vmem:[%s10 + $0xc8] sm:$0xff]
    %v439 = vld [vmem:[%s10 + $0xd0] sm:$0xff]
    %v440 = vld [vmem:[%s10 + $0xd8] sm:$0xff]
    %v441 = vld [vmem:[%s10 + $0xe0] sm:$0xff]
    %v442 = vld [vmem:[%s10 + $0xe8] sm:$0xff]
    %v443 = vld [vmem:[%s10 + $0xf0] sm:$0xff]
    %v444 = vld [vmem:[%s10 + $0xf8] sm:$0xff]
    %v445 = vld [vmem:[%s10 + $0x100] sm:$0xff]
    %v446 = vld [vmem:[%s10 + $0x108] sm:$0xff]
    %v447 = vld [vmem:[%s10 + $0x110] sm:$0xff]
    %v448 = vld [vmem:[%s10 + $0x118] sm:$0xff]
    %v449 = vld [vmem:[%s10 + $0x120] sm:$0xff]
    %v450 = vld [vmem:[%s10 + $0x128] sm:$0xff]
    %v451 = vld [vmem:[%s10 + $0x130] sm:$0xff]
    %v452 = vld [vmem:[%s10 + $0x138] sm:$0xff]
    %v453 = vld [vmem:[%s10 + $0x140] sm:$0xff]
    %v454 = vld [vmem:[%s10 + $0x148] sm:$0xff]
    %v455 = vld [vmem:[%s10 + $0x150] sm:$0xff]
    %v456 = vld [vmem:[%s10 + $0x158] sm:$0xff]
    %v457 = vld [vmem:[%s10 + $0x160] sm:$0xff]
    %v458 = vld [vmem:[%s10 + $0x168] sm:$0xff]
    %v459 = vld [vmem:[%s10 + $0x170] sm:$0xff]
    %v460 = vld [vmem:[%s10 + $0x178] sm:$0xff]
    %v461 = vld [vmem:[%s10 + $0x180] sm:$0xff]
    %v462 = vld [vmem:[%s10 + $0x188] sm:$0xff]
    %v463 = vld [vmem:[%s10 + $0x190] sm:$0xff]
    %v464 = vld [vmem:[%s10 + $0x198] sm:$0xff]
    %v465 = vld [vmem:[%s10 + $0x1a0] sm:$0xff]
    %v466 = vld [vmem:[%s10 + $0x1a8] sm:$0xff]
    %v467 = vld [vmem:[%s10 + $0x1b0] sm:$0xff]
    %v468 = vld [vmem:[%s10 + $0x1b8] sm:$0xff]
    %v469 = vld [vmem:[%s11] sm:$0x7f]
    %v471 = vperm.slane %v469, 0
    %v472 = vperm.slane %v469, 1
    %v473 = vperm.slane %v469, 2
    %v474 = vperm.slane %v469, 3
    %v475 = vperm.slane %v469, 4
    %v476 = vperm.slane %v469, 5
    %v477 = vperm.slane %v469, 6
    %v486 = vsel %vm312, %v412, 0
    %488 = vmatpush.msra.mxu0 0.0
    %489 = vmatpush.msra.mxu0 0.0
    %490 = vmatpush.msra.mxu0 0.0
    %491 = vmatpush.msra.mxu0 0.0
    %492 = vmatpush.msra.mxu0 0.0
    %493 = vmatpush.msra.mxu0 0.0
    %494 = vmatpush.msra.mxu0 0.0
    %495 = vmatpush.msra.mxu0 0.0
    %496 = vmatpush.msra.mxu0 %v462
    %497 = vmatpush.msra.mxu0 %v455
    %498 = vmatpush.msra.mxu0 %v448
    %499 = vmatpush.msra.mxu0 %v441
    %500 = vmatpush.msra.mxu0 %v434
    %501 = vmatpush.msra.mxu0 %v427
    %502 = vmatpush.msra.mxu0 %v420
    %503 = vmatpush.msra.mxu0 %v413
    %504 = vmatmul.f32.gmra.mxu0 %v486
    %v505 = vpop.f32.mrf.mxu0
    %v506 = vadd.f32 %v471, %v505
    %507 = vdwg.mxu0
    %508 = vmatpush.msra.mxu0 0.0
    %509 = vmatpush.msra.mxu0 0.0
    %510 = vmatpush.msra.mxu0 0.0
    %511 = vmatpush.msra.mxu0 0.0
    %512 = vmatpush.msra.mxu0 0.0
    %513 = vmatpush.msra.mxu0 0.0
    %514 = vmatpush.msra.mxu0 0.0
    %515 = vmatpush.msra.mxu0 0.0
    %516 = vmatpush.msra.mxu0 %v463
    %517 = vmatpush.msra.mxu0 %v456
    %518 = vmatpush.msra.mxu0 %v449
    %519 = vmatpush.msra.mxu0 %v442
    %520 = vmatpush.msra.mxu0 %v435
    %521 = vmatpush.msra.mxu0 %v428
    %522 = vmatpush.msra.mxu0 %v421
    %523 = vmatpush.msra.mxu0 %v414
    %524 = vmatmul.f32.gmra.mxu0 %v486
    %v525 = vpop.f32.mrf.mxu0
    %v526 = vadd.f32 %v472, %v525
    %527 = vdwg.mxu0
    %528 = vmatpush.msra.mxu0 0.0
    %529 = vmatpush.msra.mxu0 0.0
    %530 = vmatpush.msra.mxu0 0.0
    %531 = vmatpush.msra.mxu0 0.0
    %532 = vmatpush.msra.mxu0 0.0
    %533 = vmatpush.msra.mxu0 0.0
    %534 = vmatpush.msra.mxu0 0.0
    %535 = vmatpush.msra.mxu0 0.0
    %536 = vmatpush.msra.mxu0 %v464
    %537 = vmatpush.msra.mxu0 %v457
    %538 = vmatpush.msra.mxu0 %v450
    %539 = vmatpush.msra.mxu0 %v443
    %540 = vmatpush.msra.mxu0 %v436
    %541 = vmatpush.msra.mxu0 %v429
    %542 = vmatpush.msra.mxu0 %v422
    %543 = vmatpush.msra.mxu0 %v415
    %544 = vmatmul.f32.gmra.mxu0 %v486
    %v545 = vpop.f32.mrf.mxu0
    %v546 = vadd.f32 %v473, %v545
    %547 = vdwg.mxu0
    %548 = vmatpush.msra.mxu0 0.0
    %549 = vmatpush.msra.mxu0 0.0
    %550 = vmatpush.msra.mxu0 0.0
    %551 = vmatpush.msra.mxu0 0.0
    %552 = vmatpush.msra.mxu0 0.0
    %553 = vmatpush.msra.mxu0 0.0
    %554 = vmatpush.msra.mxu0 0.0
    %555 = vmatpush.msra.mxu0 0.0
    %556 = vmatpush.msra.mxu0 %v465
    %557 = vmatpush.msra.mxu0 %v458
    %558 = vmatpush.msra.mxu0 %v451
    %559 = vmatpush.msra.mxu0 %v444
    %560 = vmatpush.msra.mxu0 %v437
    %561 = vmatpush.msra.mxu0 %v430
    %562 = vmatpush.msra.mxu0 %v423
    %563 = vmatpush.msra.mxu0 %v416
    %564 = vmatmul.f32.gmra.mxu0 %v486
    %v565 = vpop.f32.mrf.mxu0
    %v566 = vadd.f32 %v474, %v565
    %567 = vdwg.mxu0
    %568 = vmatpush.msra.mxu0 0.0
    %569 = vmatpush.msra.mxu0 0.0
    %570 = vmatpush.msra.mxu0 0.0
    %571 = vmatpush.msra.mxu0 0.0
    %572 = vmatpush.msra.mxu0 0.0
    %573 = vmatpush.msra.mxu0 0.0
    %574 = vmatpush.msra.mxu0 0.0
    %575 = vmatpush.msra.mxu0 0.0
    %576 = vmatpush.msra.mxu0 %v466
    %577 = vmatpush.msra.mxu0 %v459
    %578 = vmatpush.msra.mxu0 %v452
    %579 = vmatpush.msra.mxu0 %v445
    %580 = vmatpush.msra.mxu0 %v438
    %581 = vmatpush.msra.mxu0 %v431
    %582 = vmatpush.msra.mxu0 %v424
    %583 = vmatpush.msra.mxu0 %v417
    %584 = vmatmul.f32.gmra.mxu0 %v486
    %v585 = vpop.f32.mrf.mxu0
    %v586 = vadd.f32 %v475, %v585
    %587 = vdwg.mxu0
    %588 = vmatpush.msra.mxu0 0.0
    %589 = vmatpush.msra.mxu0 0.0
    %590 = vmatpush.msra.mxu0 0.0
    %591 = vmatpush.msra.mxu0 0.0
    %592 = vmatpush.msra.mxu0 0.0
    %593 = vmatpush.msra.mxu0 0.0
    %594 = vmatpush.msra.mxu0 0.0
    %595 = vmatpush.msra.mxu0 0.0
    %596 = vmatpush.msra.mxu0 %v467
    %597 = vmatpush.msra.mxu0 %v460
    %598 = vmatpush.msra.mxu0 %v453
    %599 = vmatpush.msra.mxu0 %v446
    %600 = vmatpush.msra.mxu0 %v439
    %601 = vmatpush.msra.mxu0 %v432
    %602 = vmatpush.msra.mxu0 %v425
    %603 = vmatpush.msra.mxu0 %v418
    %604 = vmatmul.f32.gmra.mxu0 %v486
    %v605 = vpop.f32.mrf.mxu0
    %v606 = vadd.f32 %v476, %v605
    %607 = vdwg.mxu0
    %608 = vmatpush.msra.mxu0 0.0
    %609 = vmatpush.msra.mxu0 0.0
    %610 = vmatpush.msra.mxu0 0.0
    %611 = vmatpush.msra.mxu0 0.0
    %612 = vmatpush.msra.mxu0 0.0
    %613 = vmatpush.msra.mxu0 0.0
    %614 = vmatpush.msra.mxu0 0.0
    %615 = vmatpush.msra.mxu0 0.0
    %616 = vmatpush.msra.mxu0 %v468
    %617 = vmatpush.msra.mxu0 %v461
    %618 = vmatpush.msra.mxu0 %v454
    %619 = vmatpush.msra.mxu0 %v447
    %620 = vmatpush.msra.mxu0 %v440
    %621 = vmatpush.msra.mxu0 %v433
    %622 = vmatpush.msra.mxu0 %v426
    %623 = vmatpush.msra.mxu0 %v419
    %624 = vmatmul.f32.gmra.mxu0 %v486
    %v625 = vpop.f32.mrf.mxu0
    %v626 = vadd.f32 %v477, %v625
    %627 = vdwg.mxu0
    %v628 = vmul.f32 %v506, 0.5
    %v629 = vmul.f32 %v526, 0.5
    %v630 = vmul.f32 %v546, 0.5
    %v631 = vmul.f32 %v566, 0.5
    %v632 = vmul.f32 %v586, 0.5
    %v633 = vmul.f32 %v606, 0.5
    %v634 = vmul.f32 %v626, 0.5
    %v635 = vtanh.pop %v628
    %v636 = vtanh.pop %v629
    %v637 = vtanh.pop %v630
    %v638 = vtanh.pop %v631
    %v639 = vtanh.pop %v632
    %v640 = vtanh.pop %v633
    %v641 = vtanh.pop %v634
    %v642 = vadd.f32 %v635, 1.0
    %v643 = vadd.f32 %v636, 1.0
    %v644 = vadd.f32 %v637, 1.0
    %v645 = vadd.f32 %v638, 1.0
    %v646 = vadd.f32 %v639, 1.0
    %v647 = vadd.f32 %v640, 1.0
    %v648 = vadd.f32 %v641, 1.0
    %v649 = vmul.f32 %v642, 0.5
    %v650 = vmul.f32 %v643, 0.5
    %v651 = vmul.f32 %v644, 0.5
    %v652 = vmul.f32 %v645, 0.5
    %v653 = vmul.f32 %v646, 0.5
    %v654 = vmul.f32 %v647, 0.5
    %v655 = vmul.f32 %v648, 0.5
    %656 = vst [vmem:[#allocation2] sm:$0xff] %v649
    %657 = vst [vmem:[#allocation2 + $0x8] sm:$0xff] %v650
    %658 = vst [vmem:[#allocation2 + $0x10] sm:$0xff] %v651
    %659 = vst [vmem:[#allocation2 + $0x18] sm:$0xff] %v652
    %660 = vst [vmem:[#allocation2 + $0x20] sm:$0xff] %v653
    %661 = vst [vmem:[#allocation2 + $0x28] sm:$0xff] %v654
    %662 = vst.msk [vmem:[#allocation2 + $0x30] sm:$0xff] %vm155, %v655
    %663 = vst.msk [vmem:[#allocation4] sm:$0xff] %vm344, %v366
    %665 = vrot.lane.b32.xlu0 %v366, 96
    %v666 = vpop.permute.xlu0 %665
    %668 = vst.msk [vmem:[#allocation6] sm:$0xff] %vm344, %v666
    // Predicated region
    $region50: #{tpu_custom_call.1} parent=1 // pred_check
      _
    $region51: #{tpu_custom_call.1} parent=1 // pred_check_branch
      %670 = sbr.rel (0) target = $region53
    $region52: #{tpu_custom_call.1} parent=1 // pred_region
      %672 = vsyncadd [#allocation3], 0
      %s674 = sshll.u32 [#allocation2], 4
      %s675 = int_to_ptr.vmem [resolvable:$true] %s674
      %s676 = sshll.u32 %s12, 4
      %s677 = int_to_ptr.hbm [resolvable:$true] %s676
      %679 = dma.vmem_to_hbm [thread:$0]  %s675, 896, %s677, [#allocation3]
    $region53: #{tpu_custom_call.1} parent=1 // pred_fallthru
      _
    // Predicated region
    $region54: #{tpu_custom_call.1} parent=1 // pred_check
      _
    $region55: #{tpu_custom_call.1} parent=1 // pred_check_branch
      %681 = sbr.rel (0) target = $region57
    $region56: #{tpu_custom_call.1} parent=1 // pred_region
      %683 = vsyncadd [#allocation5], 0
      %s685 = sshll.u32 [#allocation4], 4
      %s686 = int_to_ptr.vmem [resolvable:$true] %s685
      %s687 = sshll.u32 %s13, 4
      %s688 = int_to_ptr.hbm [resolvable:$true] %s687
      %690 = dma.vmem_to_hbm [thread:$0]  %s686, 128, %s688, [#allocation5]
    $region57: #{tpu_custom_call.1} parent=1 // pred_fallthru
      _
    // Predicated region
    $region58: #{tpu_custom_call.1} parent=1 // pred_check
      _
    $region59: #{tpu_custom_call.1} parent=1 // pred_check_branch
      %692 = sbr.rel (0) target = $region61
    $region60: #{tpu_custom_call.1} parent=1 // pred_region
      %694 = vsyncadd [#allocation5], 0
      %s696 = sshll.u32 [#allocation6], 4
      %s697 = int_to_ptr.vmem [resolvable:$true] %s696
      %s698 = sshll.u32 %s14, 4
      %s699 = int_to_ptr.hbm [resolvable:$true] %s698
      %701 = dma.vmem_to_hbm [thread:$0]  %s697, 128, %s699, [#allocation5]
    $region61: #{tpu_custom_call.1} parent=1 // pred_fallthru
      _
    // Predicated region
    $region62: #{tpu_custom_call.1} parent=1 // pred_check
      _
    $region63: #{tpu_custom_call.1} parent=1 // pred_check_branch
      %703 = sbr.rel (0) target = $region65
    $region64: #{tpu_custom_call.1} parent=1 // pred_region
      %705 = dma.done [#allocation3], 896
    $region65: #{tpu_custom_call.1} parent=1 // pred_fallthru
      _
    // Predicated region
    $region66: #{tpu_custom_call.1} parent=1 // pred_check
      _
    $region67: #{tpu_custom_call.1} parent=1 // pred_check_branch
      %707 = sbr.rel (0) target = $region69
    $region68: #{tpu_custom_call.1} parent=1 // pred_region
      %709 = dma.done [#allocation5], 128
    $region69: #{tpu_custom_call.1} parent=1 // pred_fallthru
      _
    // Predicated region
    $region70: #{tpu_custom_call.1} parent=1 // pred_check
      _
    $region71: #{tpu_custom_call.1} parent=1 // pred_check_branch
      %711 = sbr.rel (0) target = $region73
    $region72: #{tpu_custom_call.1} parent=1 // pred_region
      %713 = dma.done [#allocation5], 128
    $region73: #{tpu_custom_call.1} parent=1 // pred_fallthru
      _
    %714 = vsyncpa [#allocation3], 1
    %715 = vsyncpa [#allocation5], 1

</llo_original>
